<compile_context>
chip_gen: v7x
topology: tpu7x:2x2x1
jax: 0.10.0
libtpu: 0.0.40
codegen_flags: <defaults>
</compile_context>

<pallas_src>
import functools
import math

import jax
import jax.numpy as jnp
from jax import lax
from jax.experimental import pallas as pl
from jax.experimental.pallas import tpu as pltpu

_LANES = 128


def _bce_iou_kernel(pred_ref, target_ref, out_ref, *, tile_rows, n_valid):
    """Accumulate per-sample linear partials into out_ref (block (1, 3, 1, 128)).

    out_ref[0, 0] : sum of BCE-with-logits terms
    out_ref[0, 1] : sum of sigmoid(x) * y          (intersection)
    out_ref[0, 2] : sum of sigmoid(x) + y          (union + intersection)
    """
    k = pl.program_id(1)

    @pl.when(k == 0)
    def _init():
        out_ref[...] = jnp.zeros_like(out_ref)

    x = pred_ref[0].astype(jnp.float32)      # (tile_rows, 128) logits
    y = target_ref[0].astype(jnp.float32)    # (tile_rows, 128) targets in [0, 1]

    # In-kernel tail masking (replaces the wrapper-side pad pass).  Garbage rows from a
    # clamped edge DMA are forced to x = -30, y = 0, which contribute exactly 0 to all
    # three partial sums (sigmoid(30) rounds to 1.0 in f32, so -log(s) == 0, p == 0).
    row = lax.broadcasted_iota(jnp.int32, (tile_rows, _LANES), 0)
    lane = lax.broadcasted_iota(jnp.int32, (tile_rows, _LANES), 1)
    idx = (k * tile_rows + row) * _LANES + lane
    valid = idx < n_valid
    x = jnp.where(valid, x, -30.0)
    y = jnp.where(valid, y, 0.0)

    # Two EUP ops per element (tanh + log) instead of exp + log1p + divide.
    s = 0.5 * (1.0 + jnp.tanh(0.5 * jnp.abs(x)))       # sigmoid(|x|)
    p = jnp.where(x >= 0.0, s, 1.0 - s)                # sigmoid(x), numerically stable
    bce = jnp.maximum(x, 0.0) - x * y - jnp.log(s)     # stable BCEWithLogits term

    out_ref[0, 0] += jnp.sum(bce, axis=0, keepdims=True)     # (1, 128) lane partials
    out_ref[0, 1] += jnp.sum(p * y, axis=0, keepdims=True)
    out_ref[0, 2] += jnp.sum(p + y, axis=0, keepdims=True)


def _vmem_capacity_bytes():
    try:
        return int(pltpu.get_tpu_info().vmem_capacity_bytes)
    except Exception:
        return 64 << 20   # conservative fallback (v7x per-TC VMEM)


def binary_bce_iou_loss(pred, target, *, alpha=0.5, beta=0.5, smooth=1.0):
    """pred: (B, ...) logits; target: (B, ...) targets in [0, 1] (any float/int dtype).

    Returns scalar f32 = alpha * IoU_loss(sigmoid(pred), target) + beta * BCEWithLogits.
    """
    assert pred.shape[0] == target.shape[0], "predictions and targets shapes don't match"
    B = pred.shape[0]
    N = math.prod(pred.shape[1:])

    pred2 = pred.reshape(B, N)
    target2 = target.reshape(B, N)            # keep native (narrow) dtype; upcast in-kernel
    n128 = pl.cdiv(N, _LANES) * _LANES
    if n128 != N:
        # TODO(synk): a 2-D element-masked path would avoid this copy when N % 128 != 0;
        # pad values are irrelevant (the kernel masks on the true element count N).
        pred2 = jnp.pad(pred2, ((0, 0), (0, n128 - N)))
        target2 = jnp.pad(target2, ((0, 0), (0, n128 - N)))
    rows = n128 // _LANES
    pred3 = pred2.reshape(B, rows, _LANES)        # free reshape (row-major)
    target3 = target2.reshape(B, rows, _LANES)

    # --- generation-aware tile size --------------------------------------------------
    p_bytes = pred3.dtype.itemsize
    t_bytes = target3.dtype.itemsize
    # Sublane-packing multiple: 8 rows for f32, 16 for bf16, 32 for int8 targets.
    mult = max(8, 32 // p_bytes, 32 // t_bytes)
    vmem_cap = _vmem_capacity_bytes()
    budget = max(1 << 20, min(8 << 20, vmem_cap // 20))       # per f32-equivalent buffer
    cap_rows = max(mult, (budget // (_LANES * 4)) // mult * mult)
    if rows <= cap_rows:
        tile_r = rows            # single row-tile; full-dim block is always legal
    else:
        tile_r = cap_rows
    steps = pl.cdiv(rows, tile_r)
    vmem_limit = min(vmem_cap // 2, 48 << 20)

    kernel = functools.partial(_bce_iou_kernel, tile_rows=tile_r, n_valid=N)

    bytes_accessed = (pred3.size * p_bytes + target3.size * t_bytes
                      + B * 3 * _LANES * 4)
    cost = pl.CostEstimate(flops=14 * B * rows * _LANES,
                           transcendentals=2 * B * rows * _LANES,
                           bytes_accessed=bytes_accessed)

    partials = pl.pallas_call(
        kernel,
        out_shape=jax.ShapeDtypeStruct((B, 3, 1, _LANES), jnp.float32),
        grid_spec=pltpu.PrefetchScalarGridSpec(
            num_scalar_prefetch=0,
            grid=(B, steps),
            in_specs=[
                pl.BlockSpec((1, tile_r, _LANES), lambda b, k: (b, k, 0)),
                pl.BlockSpec((1, tile_r, _LANES), lambda b, k: (b, k, 0)),
            ],
            out_specs=pl.BlockSpec((1, 3, 1, _LANES), lambda b, k: (b, 0, 0, 0)),
        ),
        compiler_params=pltpu.CompilerParams(
            dimension_semantics=("parallel", "arbitrary"),
            vmem_limit_bytes=vmem_limit,
        ),
        cost_estimate=cost,
    )(pred3, target3)

    # Nonlinear per-sample IoU ratio + global combine on tiny (B, 3) data (wrapper side,
    # so the "parallel" batch axis never has two cores writing the same output block).
    sums = jnp.sum(partials, axis=(2, 3))                  # (B, 3)
    bce_loss = jnp.sum(sums[:, 0]) / (B * N)
    inter = sums[:, 1]
    union = sums[:, 2] - inter
    iou_loss = jnp.mean(1.0 - (inter + smooth) / (union + smooth))
    return alpha * iou_loss + beta * bce_loss


def _reference(pred, target, alpha=0.5, beta=0.5, smooth=1.0):
    x = pred.astype(jnp.float32)
    y = target.astype(jnp.float32)
    bce = jnp.mean(jnp.maximum(x, 0.0) - x * y + jnp.log1p(jnp.exp(-jnp.abs(x))))
    p = jax.nn.sigmoid(x).reshape(x.shape[0], -1)
    t = y.reshape(y.shape[0], -1)
    inter = jnp.sum(p * t, axis=1)
    union = jnp.sum(p + t, axis=1) - inter
    iou = jnp.mean(1.0 - (inter + smooth) / (union + smooth))
    return alpha * iou + beta * bce


if __name__ == "__main__":
    key = jax.random.PRNGKey(0)
    k1, k2 = jax.random.split(key)

    B, C, H, W = 2, 4, 16, 16
    pred = jax.random.normal(k1, (B, C, H, W), dtype=jnp.float32)               # logits
    # Binary mask shipped as bf16 (exact 0/1); int8 also works and halves target traffic.
    target = (jax.random.uniform(k2, (B, C, H, W)) > 0.5).astype(jnp.bfloat16)

    loss = binary_bce_iou_loss(pred, target, alpha=0.5, beta=0.5, smooth=1.0)
    loss = jax.block_until_ready(loss)

    ref = _reference(pred, target)
    # Slightly looser tolerance than before: sigmoid/log computed via the 2-EUP
    # tanh/log formulation differs from the exp-based reference by ~1e-6.
    assert jnp.allclose(loss, ref, rtol=1e-4, atol=1e-4), (loss, ref)

    print("KERNEL_OK")
</pallas_src>

<mosaic_0001>
module attributes {stable_mosaic.version = 11 : i64} {
  func.func @_bce_iou_kernel(%arg0: i32, %arg1: i32, %arg2: memref<1x8x128xf32, #tpu.memory_space<vmem>>, %arg3: memref<1x8x128xbf16, #tpu.memory_space<vmem>>, %arg4: memref<1x3x1x128xf32, #tpu.memory_space<vmem>>) attributes {dimension_semantics = [#tpu.dimension_semantics<parallel>, #tpu.dimension_semantics<arbitrary>], iteration_bounds = array<i64: 2, 1>, scalar_prefetch = 0 : i64, scratch_operands = 0 : i64, tpu.core_type = #tpu.core_type<tc>, window_params = [{transform_indices = @transform_0, window_bounds = array<i64: 1, 8, 128>}, {transform_indices = @transform_1, window_bounds = array<i64: 1, 8, 128>}, {transform_indices = @transform_2, window_bounds = array<i64: 1, 3, 1, 128>}]} {
    %c0_i32 = arith.constant 0 : i32
    %0 = arith.cmpi eq, %arg1, %c0_i32 : i32
    %1 = arith.extui %0 : i1 to i32
    %c0_i32_0 = arith.constant 0 : i32
    %2 = arith.cmpi ne, %1, %c0_i32_0 : i32
    scf.if %2 {
      %cst_38 = arith.constant 0.000000e+00 : f32
      %67 = vector.broadcast %cst_38 : f32 to vector<1x3x1x128xf32>
      %c0_39 = arith.constant 0 : index
      %c0_40 = arith.constant 0 : index
      %c0_41 = arith.constant 0 : index
      %c0_42 = arith.constant 0 : index
      %68 = vector.load %arg4[%c0_39, %c0_40, %c0_41, %c0_42] : memref<1x3x1x128xf32, #tpu.memory_space<vmem>>, vector<1x3x1x128xf32>
      tpu.vector_store %arg4[%c0_39, %c0_40, %c0_41, %c0_42], %67 {strides = array<i32>} : memref<1x3x1x128xf32, #tpu.memory_space<vmem>>, vector<1x3x1x128xf32>,
    } else {
    }
    %c0 = arith.constant 0 : index
    %c0_1 = arith.constant 0 : index
    %c0_2 = arith.constant 0 : index
    %3 = vector.load %arg2[%c0, %c0_1, %c0_2] : memref<1x8x128xf32, #tpu.memory_space<vmem>>, vector<1x8x128xf32>
    %4 = vector.shape_cast %3 : vector<1x8x128xf32> to vector<8x128xf32>
    %c0_3 = arith.constant 0 : index
    %c0_4 = arith.constant 0 : index
    %c0_5 = arith.constant 0 : index
    %5 = vector.load %arg3[%c0_3, %c0_4, %c0_5] : memref<1x8x128xbf16, #tpu.memory_space<vmem>>, vector<1x8x128xbf16>
    %6 = vector.shape_cast %5 : vector<1x8x128xbf16> to vector<8x128xbf16>
    %7 = arith.extf %6 : vector<8x128xbf16> to vector<8x128xf32>
    %8 = tpu.iota {dimensions = array<i32: 0>} : vector<8x128xi32>
    %9 = tpu.iota {dimensions = array<i32: 1>} : vector<8x128xi32>
    %c8_i32 = arith.constant 8 : i32
    %10 = arith.muli %arg1, %c8_i32 : i32
    %11 = vector.broadcast %10 : i32 to vector<8x128xi32>
    %12 = arith.addi %11, %8 : vector<8x128xi32>
    %c128_i32 = arith.constant 128 : i32
    %13 = vector.broadcast %c128_i32 : i32 to vector<8x128xi32>
    %14 = arith.muli %12, %13 : vector<8x128xi32>
    %15 = arith.addi %14, %9 : vector<8x128xi32>
    %c1024_i32 = arith.constant 1024 : i32
    %16 = vector.broadcast %c1024_i32 : i32 to vector<8x128xi32>
    %17 = arith.cmpi slt, %15, %16 : vector<8x128xi32>
    %cst = arith.constant -3.000000e+01 : f32
    %18 = vector.broadcast %cst : f32 to vector<8x128xf32>
    %19 = arith.select %17, %4, %18 : vector<8x128xi1>, vector<8x128xf32>
    %cst_6 = arith.constant 0.000000e+00 : f32
    %20 = vector.broadcast %cst_6 : f32 to vector<8x128xf32>
    %21 = arith.select %17, %7, %20 : vector<8x128xi1>, vector<8x128xf32>
    %22 = math.absf %19 : vector<8x128xf32>
    %cst_7 = arith.constant 5.000000e-01 : f32
    %23 = vector.broadcast %cst_7 : f32 to vector<8x128xf32>
    %24 = arith.mulf %23, %22 : vector<8x128xf32>
    %25 = math.tanh %24 : vector<8x128xf32>
    %cst_8 = arith.constant 1.000000e+00 : f32
    %26 = vector.broadcast %cst_8 : f32 to vector<8x128xf32>
    %27 = arith.addf %26, %25 : vector<8x128xf32>
    %cst_9 = arith.constant 5.000000e-01 : f32
    %28 = vector.broadcast %cst_9 : f32 to vector<8x128xf32>
    %29 = arith.mulf %28, %27 : vector<8x128xf32>
    %cst_10 = arith.constant 0.000000e+00 : f32
    %30 = vector.broadcast %cst_10 : f32 to vector<8x128xf32>
    %31 = arith.cmpf oge, %19, %30 : vector<8x128xf32>
    %cst_11 = arith.constant 1.000000e+00 : f32
    %32 = vector.broadcast %cst_11 : f32 to vector<8x128xf32>
    %33 = arith.subf %32, %29 : vector<8x128xf32>
    %34 = arith.select %31, %29, %33 : vector<8x128xi1>, vector<8x128xf32>
    %cst_12 = arith.constant 0.000000e+00 : f32
    %35 = vector.broadcast %cst_12 : f32 to vector<8x128xf32>
    %36 = arith.maximumf %19, %35 : vector<8x128xf32>
    %37 = arith.mulf %19, %21 : vector<8x128xf32>
    %38 = arith.subf %36, %37 : vector<8x128xf32>
    %39 = math.log %29 : vector<8x128xf32>
    %40 = arith.subf %38, %39 : vector<8x128xf32>
    %c0_13 = arith.constant 0 : index
    %c0_14 = arith.constant 0 : index
    %c0_15 = arith.constant 0 : index
    %c0_16 = arith.constant 0 : index
    %41 = vector.load %arg4[%c0_13, %c0_14, %c0_15, %c0_16] : memref<1x3x1x128xf32, #tpu.memory_space<vmem>>, vector<1x1x1x128xf32>
    %42 = vector.shape_cast %41 : vector<1x1x1x128xf32> to vector<1x128xf32>
    %cst_17 = arith.constant dense<0.000000e+00> : vector<128xf32>
    %43 = vector.multi_reduction <add>, %40, %cst_17 [0] : vector<8x128xf32> to vector<128xf32>
    %44 = vector.shape_cast %43 : vector<128xf32> to vector<1x128xf32>
    %45 = arith.addf %42, %44 : vector<1x128xf32>
    %c0_18 = arith.constant 0 : index
    %c0_19 = arith.constant 0 : index
    %c0_20 = arith.constant 0 : index
    %c0_21 = arith.constant 0 : index
    %46 = vector.load %arg4[%c0_18, %c0_19, %c0_20, %c0_21] : memref<1x3x1x128xf32, #tpu.memory_space<vmem>>, vector<1x1x1x128xf32>
    %47 = vector.shape_cast %46 : vector<1x1x1x128xf32> to vector<1x128xf32>
    %48 = vector.shape_cast %45 : vector<1x128xf32> to vector<1x1x1x128xf32>
    tpu.vector_store %arg4[%c0_18, %c0_19, %c0_20, %c0_21], %48 {strides = array<i32>} : memref<1x3x1x128xf32, #tpu.memory_space<vmem>>, vector<1x1x1x128xf32>,
    %c0_22 = arith.constant 0 : index
    %c1 = arith.constant 1 : index
    %c0_23 = arith.constant 0 : index
    %c0_24 = arith.constant 0 : index
    %49 = vector.load %arg4[%c0_22, %c1, %c0_23, %c0_24] : memref<1x3x1x128xf32, #tpu.memory_space<vmem>>, vector<1x1x1x128xf32>
    %50 = vector.shape_cast %49 : vector<1x1x1x128xf32> to vector<1x128xf32>
    %51 = arith.mulf %34, %21 : vector<8x128xf32>
    %cst_25 = arith.constant dense<0.000000e+00> : vector<128xf32>
    %52 = vector.multi_reduction <add>, %51, %cst_25 [0] : vector<8x128xf32> to vector<128xf32>
    %53 = vector.shape_cast %52 : vector<128xf32> to vector<1x128xf32>
    %54 = arith.addf %50, %53 : vector<1x128xf32>
    %c0_26 = arith.constant 0 : index
    %c1_27 = arith.constant 1 : index
    %c0_28 = arith.constant 0 : index
    %c0_29 = arith.constant 0 : index
    %55 = vector.load %arg4[%c0_26, %c1_27, %c0_28, %c0_29] : memref<1x3x1x128xf32, #tpu.memory_space<vmem>>, vector<1x1x1x128xf32>
    %56 = vector.shape_cast %55 : vector<1x1x1x128xf32> to vector<1x128xf32>
    %57 = vector.shape_cast %54 : vector<1x128xf32> to vector<1x1x1x128xf32>
    tpu.vector_store %arg4[%c0_26, %c1_27, %c0_28, %c0_29], %57 {strides = array<i32>} : memref<1x3x1x128xf32, #tpu.memory_space<vmem>>, vector<1x1x1x128xf32>,
    %c0_30 = arith.constant 0 : index
    %c2 = arith.constant 2 : index
    %c0_31 = arith.constant 0 : index
    %c0_32 = arith.constant 0 : index
    %58 = vector.load %arg4[%c0_30, %c2, %c0_31, %c0_32] : memref<1x3x1x128xf32, #tpu.memory_space<vmem>>, vector<1x1x1x128xf32>
    %59 = vector.shape_cast %58 : vector<1x1x1x128xf32> to vector<1x128xf32>
    %60 = arith.addf %34, %21 : vector<8x128xf32>
    %cst_33 = arith.constant dense<0.000000e+00> : vector<128xf32>
    %61 = vector.multi_reduction <add>, %60, %cst_33 [0] : vector<8x128xf32> to vector<128xf32>
    %62 = vector.shape_cast %61 : vector<128xf32> to vector<1x128xf32>
    %63 = arith.addf %59, %62 : vector<1x128xf32>
    %c0_34 = arith.constant 0 : index
    %c2_35 = arith.constant 2 : index
    %c0_36 = arith.constant 0 : index
    %c0_37 = arith.constant 0 : index
    %64 = vector.load %arg4[%c0_34, %c2_35, %c0_36, %c0_37] : memref<1x3x1x128xf32, #tpu.memory_space<vmem>>, vector<1x1x1x128xf32>
    %65 = vector.shape_cast %64 : vector<1x1x1x128xf32> to vector<1x128xf32>
    %66 = vector.shape_cast %63 : vector<1x128xf32> to vector<1x1x1x128xf32>
    tpu.vector_store %arg4[%c0_34, %c2_35, %c0_36, %c0_37], %66 {strides = array<i32>} : memref<1x3x1x128xf32, #tpu.memory_space<vmem>>, vector<1x1x1x128xf32>,
    return
  }
  func.func @transform_0(%arg0: i32, %arg1: i32) -> (i32, i32, i32) {
    %c0_i32 = arith.constant 0 : i32
    %c0_i32_0 = arith.constant 0 : i32
    return %arg0, %arg1, %c0_i32 : i32, i32, i32
  }
  func.func @transform_1(%arg0: i32, %arg1: i32) -> (i32, i32, i32) {
    %c0_i32 = arith.constant 0 : i32
    %c0_i32_0 = arith.constant 0 : i32
    return %arg0, %arg1, %c0_i32 : i32, i32, i32
  }
  func.func @transform_2(%arg0: i32, %arg1: i32) -> (i32, i32, i32, i32) {
    %c0_i32 = arith.constant 0 : i32
    %c0_i32_0 = arith.constant 0 : i32
    %c0_i32_1 = arith.constant 0 : i32
    %c0_i32_2 = arith.constant 0 : i32
    return %arg0, %c0_i32, %c0_i32_0, %c0_i32_1 : i32, i32, i32, i32
  }
}

</mosaic_0001>

<llo_original>
// kernel: tpu_custom_call.1
$region0: #{tpu_custom_call.1}
  #allocation0 [shape = 'u32[]', space=smem, size = 0x4, offset = 0x4, fixed_abs, tag = 'smem constant byte address 0x4 - core index']
  #allocation1 [shape = 'u32[144,128]{1,0:T(1,128)}', space=vmem, size = 0x12000, scoped, tag = 'internal scratch']
  %s0 = inlined_call_operand.hbm [shape: f32[2,8,128], index: 0, kind: input, shape index: {}]
  %s1 = inlined_call_operand.hbm [shape: bf16[2,8,128], index: 1, kind: input, shape index: {}]
  %s2 = inlined_call_operand.hbm [shape: f32[2,3,1,128], index: 2, kind: output, shape index: {}]
  %s3 = sld [smem:[#allocation0]]
  $region53: #{tpu_custom_call.1} parent=0
    _
  %s5 = ssub.s32 1, %s3
  %s6 = scalar_select 0, %s5, %s3
  $region1: #{tpu_custom_call.1} parent=0
    #allocation2 [shape = 'u8[8192]{0}', space=vmem, size = 0x2000, scoped, tag = 'input window, operand 0']
    #allocation3 [shape = 's32[2]{0}', space=sflag, size = 0x8, scoped, tag = 'scoped memory for tpu_custom_call.1']
    #allocation4 [shape = 's32[2]{0}', space=sflag, size = 0x8, scoped, tag = 'scoped memory for tpu_custom_call.1']
    #allocation5 [shape = 'u8[4096]{0}', space=vmem, size = 0x1000, scoped, tag = 'input window, operand 1']
    #allocation6 [shape = 's32[2]{0}', space=sflag, size = 0x8, scoped, tag = 'scoped memory for tpu_custom_call.1']
    #allocation7 [shape = 'u8[3072]{0}', space=vmem, size = 0xc00, scoped, tag = 'output window, operand 0']
    %7 = vsyncpa [#allocation3], 0
    %s8 = scalar_lea.sflag [#allocation3], 1
    %9 = vsyncpa %s8, 0
    %10 = vsyncpa [#allocation6], 0
    %s11 = scalar_lea.sflag [#allocation6], 1
    %12 = vsyncpa %s11, 0
    %13 = vsyncpa [#allocation4], 0
    %s14 = scalar_lea.sflag [#allocation4], 1
    %15 = vsyncpa %s14, 0
    loop: start=0, step=1, limit=4
    $region2: #{tpu_custom_call.1} parent=1 // loop_pre_header
      _
    $region3: #{tpu_custom_call.1} parent=1 // loop_header
      %s17 = sphi 0, %s21
      %p18 = scmp.ge.s32.totalorder %s17, 4
      %s24 = sphi 0, %s36
      %s25 = sphi 0, %s32
      %s26 = sphi 0, %s24
      %s27 = sphi 0, %s25
      %s28 = sphi 0, %s26
      %s29 = sphi 0, %s27
      %s41 = sphi 0, %s43
      %s44 = sphi 0, %s41
      %s45 = sphi 0, %s44
      %s61 = sphi 0, %s45
      %s69 = sphi 0, %s71
      %s72 = sphi 0, %s69
      %s73 = sphi 0, %s72
      %s89 = sphi 0, %s73
      %s95 = sphi 0, %s97
      %s98 = sphi 0, %s95
      %s99 = sphi 0, %s98
      %s115 = sphi 0, %s99
    $region4: #{tpu_custom_call.1} parent=1 // loop_header_branch
      %20 = sbr.rel (%p18) target = $region8
    $region5: #{tpu_custom_call.1} parent=1 // loop_body
      %s22 = ssub.s32 %s17, 1
      %s23 = ssub.s32 %s17, 2
      %s30 = sadd.s32 1, %s25
      %p31 = scmp.ge.s32.totalorder %s30, 1
      %s32 = scalar_select %p31, 0, %s30
      %s33 = sadd.s32 1, %s24
      %s34 = scalar_select %p31, %s33, %s24
      %p35 = scmp.ge.s32.totalorder %s34, 2
      %s36 = scalar_select %p35, 0, %s34
      %s37 = ssub.s32 %s24, %s36
      %s38 = ssub.s32 %s25, %s32
      %s39 = sor.u32 %s37, %s38
      %p40 = scmp.eq.s32.totalorder %s39, 0
      %s42 = sadd.s32 %s41, 1
      %s43 = scalar_select %p40, %s41, %s42
      %p46 = pneg %p40
      %p47 = scmp.eq.s32.totalorder %s17, 1
      %p48 = por %p46, %p47
      %p49 = scmp.ne.s32.totalorder %s41, %s44
      %p50 = scmp.eq.s32.totalorder %s17, 0
      %p51 = por %p49, %p50
      %p52 = scmp.ne.s32.totalorder %s41, %s44
      %p53 = scmp.eq.s32.totalorder %s22, 1
      %p54 = por %p52, %p53
      %p55 = scmp.ne.s32.totalorder %s44, %s45
      %p56 = scmp.eq.s32.totalorder %s22, 0
      %p57 = por %p55, %p56
      %p58 = scmp.ne.s32.totalorder %s44, %s45
      %p59 = scmp.eq.s32.totalorder %s23, 1
      %p60 = por %p58, %p59
      %p62 = scmp.ne.s32.totalorder %s45, %s61
      %p63 = scmp.eq.s32.totalorder %s23, 0
      %p64 = por %p62, %p63
      %s65 = ssub.s32 %s24, %s36
      %s66 = ssub.s32 %s25, %s32
      %s67 = sor.u32 %s65, %s66
      %p68 = scmp.eq.s32.totalorder %s67, 0
      %s70 = sadd.s32 %s69, 1
      %s71 = scalar_select %p68, %s69, %s70
      %p74 = pneg %p68
      %p75 = scmp.eq.s32.totalorder %s17, 1
      %p76 = por %p74, %p75
      %p77 = scmp.ne.s32.totalorder %s69, %s72
      %p78 = scmp.eq.s32.totalorder %s17, 0
      %p79 = por %p77, %p78
      %p80 = scmp.ne.s32.totalorder %s69, %s72
      %p81 = scmp.eq.s32.totalorder %s22, 1
      %p82 = por %p80, %p81
      %p83 = scmp.ne.s32.totalorder %s72, %s73
      %p84 = scmp.eq.s32.totalorder %s22, 0
      %p85 = por %p83, %p84
      %p86 = scmp.ne.s32.totalorder %s72, %s73
      %p87 = scmp.eq.s32.totalorder %s23, 1
      %p88 = por %p86, %p87
      %p90 = scmp.ne.s32.totalorder %s73, %s89
      %p91 = scmp.eq.s32.totalorder %s23, 0
      %p92 = por %p90, %p91
      %s93 = ssub.s32 %s24, %s36
      %p94 = scmp.eq.s32.totalorder %s93, 0
      %s96 = sadd.s32 %s95, 1
      %s97 = scalar_select %p94, %s95, %s96
      %p100 = pneg %p94
      %p101 = scmp.eq.s32.totalorder %s17, 1
      %p102 = por %p100, %p101
      %p103 = scmp.ne.s32.totalorder %s95, %s98
      %p104 = scmp.eq.s32.totalorder %s17, 0
      %p105 = por %p103, %p104
      %p106 = scmp.ne.s32.totalorder %s95, %s98
      %p107 = scmp.eq.s32.totalorder %s22, 1
      %p108 = por %p106, %p107
      %p109 = scmp.ne.s32.totalorder %s98, %s99
      %p110 = scmp.eq.s32.totalorder %s22, 0
      %p111 = por %p109, %p110
      %p112 = scmp.ne.s32.totalorder %s98, %s99
      %p113 = scmp.eq.s32.totalorder %s23, 1
      %p114 = por %p112, %p113
      %p116 = scmp.ne.s32.totalorder %s99, %s115
      %p117 = scmp.eq.s32.totalorder %s23, 0
      %p118 = por %p116, %p117
      %p119 = scmp.le.s32.totalorder 1, %s17
      %p120 = scmp.lt.s32.totalorder %s17, 3
      %p121 = pnand %p119, %p120
      %p122 = pneg %p121
      // Predicated region
      $region9: #{tpu_custom_call.1} parent=5 // pred_check
        _
      $region10: #{tpu_custom_call.1} parent=5 // pred_check_branch
        %124 = sbr.rel (%p121) target = $region12
      $region11: #{tpu_custom_call.1} parent=5 // pred_region
        %s125 = ssub.s32 %s17, 1
      $region12: #{tpu_custom_call.1} parent=5 // pred_fallthru
        _
      %p126 = scmp.lt.s32.totalorder %s17, 2
      // Predicated region
      $region13: #{tpu_custom_call.1} parent=5 // pred_check
        %p127 = pneg %p126
      $region14: #{tpu_custom_call.1} parent=5 // pred_check_branch
        %129 = sbr.rel (%p127) target = $region16
      $region15: #{tpu_custom_call.1} parent=5 // pred_region
        // Predicated region
        $region17: #{tpu_custom_call.1} parent=15 // pred_check
          %p130 = pneg %p51
        $region18: #{tpu_custom_call.1} parent=15 // pred_check_branch
          %132 = sbr.rel (%p130) target = $region20
        $region19: #{tpu_custom_call.1} parent=15 // pred_region
          %s133 = sand.u32 %s41, 1
          %s134 = scalar_lea.sflag [#allocation3], %s133
          %s135 = sand.u32 %s41, 1
          %s136 = smul.addr %s135, 8
          %s137 = scalar_lea.vmem [#allocation2], %s136
          %s139 = ssub.s32 128, 128
          %140 = vsyncadd %s134, %s139
          %s141 = sadd.s32 %s25, %s24
          %s142 = smul.addr %s141, 128
          %s143 = scalar_lea.hbm %s0, %s142
          %s145 = sshll.u32 %s137, 4
          %s146 = int_to_ptr.vmem [resolvable:$true] %s145
          %148 = dma.hbm_to_vmem [thread:$0]  %s143, 128, %s146, %s134
        $region20: #{tpu_custom_call.1} parent=15 // pred_fallthru
          _
        // Predicated region
        $region21: #{tpu_custom_call.1} parent=15 // pred_check
          %p149 = pneg %p79
        $region22: #{tpu_custom_call.1} parent=15 // pred_check_branch
          %151 = sbr.rel (%p149) target = $region24
        $region23: #{tpu_custom_call.1} parent=15 // pred_region
          %s152 = sand.u32 %s69, 1
          %s153 = scalar_lea.sflag [#allocation6], %s152
          %s154 = sand.u32 %s69, 1
          %s155 = smul.addr %s154, 4
          %s156 = scalar_lea.vmem [#allocation5], %s155
          %s158 = ssub.s32 64, 64
          %159 = vsyncadd %s153, %s158
          %s160 = sadd.s32 %s25, %s24
          %s161 = smul.addr %s160, 64
          %s162 = scalar_lea.hbm %s1, %s161
          %s164 = sshll.u32 %s156, 4
          %s165 = int_to_ptr.vmem [resolvable:$true] %s164
          %167 = dma.hbm_to_vmem [thread:$0]  %s162, 64, %s165, %s153
        $region24: #{tpu_custom_call.1} parent=15 // pred_fallthru
          _
      $region16: #{tpu_custom_call.1} parent=5 // pred_fallthru
        _
      %p168 = scmp.le.s32.totalorder 1, %s17
      %p169 = scmp.lt.s32.totalorder %s17, 3
      %p170 = pnand %p168, %p169
      %p171 = pneg %p170
      // Predicated region
      $region25: #{tpu_custom_call.1} parent=5 // pred_check
        _
      $region26: #{tpu_custom_call.1} parent=5 // pred_check_branch
        %173 = sbr.rel (%p170) target = $region28
      $region27: #{tpu_custom_call.1} parent=5 // pred_region
        %s174 = ssub.s32 %s17, 1
        %s175 = sand.u32 %s44, 1
        %s176 = scalar_lea.sflag [#allocation3], %s175
        %s177 = sand.u32 %s44, 1
        %s178 = smul.addr %s177, 8
        %s179 = scalar_lea.vmem [#allocation2], %s178
        // Predicated region
        $region29: #{tpu_custom_call.1} parent=27 // pred_check
          %p180 = pneg %p57
        $region30: #{tpu_custom_call.1} parent=27 // pred_check_branch
          %182 = sbr.rel (%p180) target = $region32
        $region31: #{tpu_custom_call.1} parent=27 // pred_region
          %183 = dma.done %s176, 128
        $region32: #{tpu_custom_call.1} parent=27 // pred_fallthru
          _
        %s184 = sand.u32 %s72, 1
        %s185 = scalar_lea.sflag [#allocation6], %s184
        %s186 = sand.u32 %s72, 1
        %s187 = smul.addr %s186, 4
        %s188 = scalar_lea.vmem [#allocation5], %s187
        // Predicated region
        $region33: #{tpu_custom_call.1} parent=27 // pred_check
          %p189 = pneg %p85
        $region34: #{tpu_custom_call.1} parent=27 // pred_check_branch
          %191 = sbr.rel (%p189) target = $region36
        $region35: #{tpu_custom_call.1} parent=27 // pred_region
          %192 = dma.done %s185, 64
        $region36: #{tpu_custom_call.1} parent=27 // pred_fallthru
          _
        %s193 = sand.u32 %s44, 1
        %s194 = scalar_lea.sflag [#allocation3], %s193
        %s195 = sand.u32 %s44, 1
        %s196 = smul.addr %s195, 8
        %s197 = scalar_lea.vmem [#allocation2], %s196
        %p198 = pneg %p57
        %p199 = pneg %p54
        %s200 = sand.u32 %s72, 1
        %s201 = scalar_lea.sflag [#allocation6], %s200
        %s202 = sand.u32 %s72, 1
        %s203 = smul.addr %s202, 4
        %s204 = scalar_lea.vmem [#allocation5], %s203
        %p205 = pneg %p85
        %p206 = pneg %p82
        %p207 = pneg %p111
        %p208 = pneg %p108
        %s209 = sand.u32 %s98, 1
        %s210 = scalar_lea.sflag [#allocation4], %s209
        %s211 = sand.u32 %s98, 1
        %s212 = smul.addr %s211, 3
        %s213 = scalar_lea.vmem [#allocation7], %s212
        %p214 = scmp.eq.s32.totalorder %s27, 0
        // Predicated region
        $region37: #{tpu_custom_call.1} parent=27 // pred_check
          %p215 = pneg %p214
        $region38: #{tpu_custom_call.1} parent=27 // pred_check_branch
          %217 = sbr.rel (%p215) target = $region40
        $region39: #{tpu_custom_call.1} parent=27 // pred_region
          %218 = vst [vmem:[%s213] sm:$0x1] 0.0
          %219 = vst [vmem:[%s213 + $0x1] sm:$0x1] 0.0
          %220 = vst [vmem:[%s213 + $0x2] sm:$0x1] 0.0
        $region40: #{tpu_custom_call.1} parent=27 // pred_fallthru
          _
        %v221 = vld [vmem:[%s179] sm:$0xff]
        %v222 = vld [vmem:[%s188] sm:$0xf]
        %v223 = vunpack.c.l.bf16 %v222
        %v224 = vlaneseq
        %v225 = vshrl.u32 %v224, 7
        %v226 = vlaneseq
        %v227 = vand.u32 %v226, 127
        %s228 = smul.u32 %s27, 8
        %v229 = vstv %s228
        %v230 = vadd.s32 %v229, %v225
        %v231 = vmul.u32 %v230, 128
        %v232 = vadd.s32 %v231, %v227
        %vm233 = vcmp.lt.s32.totalorder %v232, 1024
        %v234 = vsel %vm233, %v221, -30.0
        %v235 = vsel %vm233, %v223, 0.0
        %v236 = vand.u32 2147483647, %v234
        %v237 = vmul.f32 %v236, 0.5
        %v238 = vtanh.pop %v237
        %v239 = vadd.f32 %v238, 1.0
        %v240 = vmul.f32 %v239, 0.5
        %vm241 = vcmp.ge.f32.partialorder %v234, 0.0
        %v242 = vsub.f32 1.0, %v240
        %v243 = vsel %vm241, %v240, %v242
        %v244 = vmax.f32 %v234, 0.0
        %v245 = vmul.f32 %v234, %v235
        %v246 = vsub.f32 %v244, %v245
        %v247 = vlog2.pop %v240
        %v248 = vmul.f32 %v247, 0.6931472
        %v249 = vsub.f32 %v246, %v248
        %v250 = vld [vmem:[%s213] sm:$0x1]
        %v251 = vrot.slane %v249, 4
        %v252 = vadd.f32 %v249, %v251
        %v253 = vrot.slane %v252, 2
        %v254 = vadd.f32 %v252, %v253
        %v255 = vrot.slane %v254, 1
        %v256 = vadd.f32 %v254, %v255
        %v257 = vadd.f32 %v250, %v256
        %258 = vst [vmem:[%s213] sm:$0x1] %v257
        %s259 = scalar_lea.vmem %s213, 1 [#allocation7]
        %v260 = vld [vmem:[%s259] sm:$0x1]
        %v261 = vmul.f32 %v243, %v235
        %v262 = vrot.slane %v261, 4
        %v263 = vadd.f32 %v261, %v262
        %v264 = vrot.slane %v263, 2
        %v265 = vadd.f32 %v263, %v264
        %v266 = vrot.slane %v265, 1
        %v267 = vadd.f32 %v265, %v266
        %v268 = vadd.f32 %v260, %v267
        %269 = vst [vmem:[%s259] sm:$0x1] %v268
        %s270 = scalar_lea.vmem %s213, 2 [#allocation7]
        %v271 = vld [vmem:[%s270] sm:$0x1]
        %v272 = vadd.f32 %v243, %v235
        %v273 = vrot.slane %v272, 4
        %v274 = vadd.f32 %v272, %v273
        %v275 = vrot.slane %v274, 2
        %v276 = vadd.f32 %v274, %v275
        %v277 = vrot.slane %v276, 1
        %v278 = vadd.f32 %v276, %v277
        %v279 = vadd.f32 %v271, %v278
        %280 = vst [vmem:[%s270] sm:$0x1] %v279
        %s281 = sand.u32 %s98, 1
        %s282 = scalar_lea.sflag [#allocation4], %s281
        %s283 = sand.u32 %s98, 1
        %s284 = smul.addr %s283, 3
        %s285 = scalar_lea.vmem [#allocation7], %s284
        // Predicated region
        $region41: #{tpu_custom_call.1} parent=27 // pred_check
          %p286 = pneg %p108
        $region42: #{tpu_custom_call.1} parent=27 // pred_check_branch
          %288 = sbr.rel (%p286) target = $region44
        $region43: #{tpu_custom_call.1} parent=27 // pred_region
          %s290 = ssub.s32 48, 48
          %291 = vsyncadd %s282, %s290
          %s292 = smul.addr %s26, 3
          %s293 = smul.addr %s292, 16
          %s294 = scalar_lea.hbm %s2, %s293
          %s295 = sshll.u32 %s285, 4
          %s296 = int_to_ptr.vmem [resolvable:$true] %s295
          %301 = dma.vmem_to_hbm [thread:$0]  %s296, 48, %s294, %s282, 16, 16, 1
        $region44: #{tpu_custom_call.1} parent=27 // pred_fallthru
          _
      $region28: #{tpu_custom_call.1} parent=5 // pred_fallthru
        _
      %p302 = scmp.le.s32.totalorder 2, %s17
      // Predicated region
      $region45: #{tpu_custom_call.1} parent=5 // pred_check
        %p303 = pneg %p302
      $region46: #{tpu_custom_call.1} parent=5 // pred_check_branch
        %305 = sbr.rel (%p303) target = $region48
      $region47: #{tpu_custom_call.1} parent=5 // pred_region
        %s306 = ssub.s32 %s17, 2
        // Predicated region
        $region49: #{tpu_custom_call.1} parent=47 // pred_check
          %p307 = pneg %p114
        $region50: #{tpu_custom_call.1} parent=47 // pred_check_branch
          %309 = sbr.rel (%p307) target = $region52
        $region51: #{tpu_custom_call.1} parent=47 // pred_region
          %s310 = sand.u32 %s99, 1
          %s311 = scalar_lea.sflag [#allocation4], %s310
          %s312 = sand.u32 %s99, 1
          %s313 = smul.addr %s312, 3
          %s314 = scalar_lea.vmem [#allocation7], %s313
          %315 = dma.done %s311, 48
        $region52: #{tpu_custom_call.1} parent=47 // pred_fallthru
          _
      $region48: #{tpu_custom_call.1} parent=5 // pred_fallthru
        _
    $region6: #{tpu_custom_call.1} parent=1 // loop_footer
      %s21 = sadd.s32 1, %s17
    $region7: #{tpu_custom_call.1} parent=1 // loop_footer_branch
      %16 = sbr.rel target = $region3
    $region8: #{tpu_custom_call.1} parent=1 // loop_exit
      _
    %316 = vsyncpa [#allocation3], 1
    %s317 = scalar_lea.sflag [#allocation3], 1
    %318 = vsyncpa %s317, 1
    %319 = vsyncpa [#allocation6], 1
    %s320 = scalar_lea.sflag [#allocation6], 1
    %321 = vsyncpa %s320, 1
    %322 = vsyncpa [#allocation4], 1
    %s323 = scalar_lea.sflag [#allocation4], 1
    %324 = vsyncpa %s323, 1

</llo_original>
